<compile_context>
chip_gen: v6e
topology: v6e:2x2x1
jax: 0.10.0
libtpu: 0.0.40
codegen_flags: <defaults>
</compile_context>

<pallas_src>
import functools

import jax
import jax.numpy as jnp
from jax.experimental import pallas as pl
from jax.experimental.pallas import tpu as pltpu

ROI_SIGMA = 1.0  # opt.roi_sigma (simple-faster-rcnn default)


def _roi_loss_kernel(loc_ref, score_ref, gt_loc_ref, label_ref, out_ref, *,
                     sigma):
    N, C4 = loc_ref.shape          # (N, 4*C)
    _, C = score_ref.shape         # (N, C)

    labels = label_ref[...]                                        # (N, 1) i32
    fg = labels > 0                                                 # (N, 1)

    # ------------- localization loss: gather first, smooth-L1 on (N, 4) -----
    loc2d = loc_ref[...].astype(jnp.float32)                        # (N, 4C)
    gt = gt_loc_ref[...].astype(jnp.float32)                        # (N, 4)

    # Lane-only iota row; lane j belongs to class j >> 2, coordinate j & 3.
    lane_row = jax.lax.broadcasted_iota(jnp.int32, (1, C4), 1)      # (1, 4C)
    sel = (lane_row >> 2) == labels                                 # (N, 4C)
    masked = jnp.where(sel, loc2d, 0.0)                             # (N, 4C)

    # Static 0/1 projection (4C, 4): proj[j, k] = (j & 3 == k).  One MXU pass
    # gathers the selected class's box:  roi_loc[n, k] = loc2d[n, 4*label+k]
    # exactly (products are x*1 or x*0, so the sum is exact).
    proj = (
        (jax.lax.broadcasted_iota(jnp.int32, (C4, 4), 0) & 3)
        == jax.lax.broadcasted_iota(jnp.int32, (C4, 4), 1)
    ).astype(jnp.float32)                                           # (4C, 4)
    roi_loc = jnp.dot(masked, proj,
                      preferred_element_type=jnp.float32)           # (N, 4)

    sigma2 = sigma * sigma
    inv_s2 = 1.0 / sigma2
    diff = jnp.where(fg, roi_loc - gt, 0.0)                         # (N, 4)
    abs_diff = jnp.abs(diff)
    # diff == 0 on background rows -> quadratic branch -> exactly 0.
    y = jnp.where(abs_diff < inv_s2,
                  (0.5 * sigma2) * diff * diff,
                  abs_diff - 0.5 * inv_s2)                          # (N, 4)
    loc_sum = jnp.sum(jnp.sum(y, axis=-1, keepdims=True),
                      axis=0, keepdims=True)                        # (1, 1)
    n_valid = jnp.sum(jnp.where(labels >= 0, 1.0, 0.0),
                      axis=0, keepdims=True)                        # (1, 1)

    # ------------- softmax cross-entropy (mean over N) -----------------------
    scores = score_ref[...].astype(jnp.float32)                     # (N, C)
    cls_row = jax.lax.broadcasted_iota(jnp.int32, (1, C), 1)        # (1, C)
    m = jnp.max(scores, axis=-1, keepdims=True)                     # (N, 1)
    lse = m + jnp.log(jnp.sum(jnp.exp(scores - m),
                              axis=-1, keepdims=True))              # (N, 1)
    true_logit = jnp.sum(jnp.where(cls_row == labels, scores, 0.0),
                         axis=-1, keepdims=True)                    # (N, 1)
    ce_sum = jnp.sum(lse - true_logit, axis=0, keepdims=True)       # (1, 1)

    # ------------- epilogue: two divides + single (1, 2) store ---------------
    loc_loss = loc_sum / n_valid                                    # (1, 1)
    cls_loss = ce_sum * (1.0 / float(N))                            # (1, 1)
    lane2 = jax.lax.broadcasted_iota(jnp.int32, (1, 2), 1)
    out_ref[...] = jnp.where(lane2 == 0, loc_loss, cls_loss)        # (1, 2)


def roi_loss(gt_roi_loc, gt_roi_label, roi_cls_loc, roi_score,
             sigma=ROI_SIGMA):
    n_sample = roi_cls_loc.shape[0]

    # Only glue: label -> int32 column vector (reshape is metadata-only; the
    # astype is a no-op when labels are already int32).  roi_cls_loc is passed
    # untouched as the original 2-D (N, 4*C) row-major array.
    labels = gt_roi_label.astype(jnp.int32).reshape(n_sample, 1)

    kernel = functools.partial(_roi_loss_kernel, sigma=float(sigma))
    out = pl.pallas_call(
        kernel,
        out_shape=jax.ShapeDtypeStruct((1, 2), jnp.float32),
        in_specs=[pl.BlockSpec(memory_space=pltpu.MemorySpace.VMEM)] * 4,
        out_specs=pl.BlockSpec(memory_space=pltpu.MemorySpace.VMEM),
    )(roi_cls_loc, roi_score, gt_roi_loc, labels)
    return out[0, 0], out[0, 1]


def _reference(gt_roi_loc, gt_roi_label, roi_cls_loc, roi_score,
               sigma=ROI_SIGMA):
    """Pure-JAX reference mirroring the PyTorch forward."""
    n_sample = roi_cls_loc.shape[0]
    n_class = roi_score.shape[1]
    loc3 = roi_cls_loc.reshape(n_sample, n_class, 4)
    roi_loc = loc3[jnp.arange(n_sample), gt_roi_label]              # (N, 4)

    sigma2 = sigma ** 2
    in_w = (gt_roi_label > 0).astype(jnp.float32)[:, None]
    diff = in_w * (roi_loc - gt_roi_loc)
    abs_diff = jnp.abs(diff)
    flag = (abs_diff < 1.0 / sigma2).astype(jnp.float32)
    y = flag * (sigma2 / 2.0) * diff ** 2 + (1 - flag) * (abs_diff - 0.5 / sigma2)
    loc_loss = y.sum() / (gt_roi_label >= 0).sum().astype(jnp.float32)

    logp = jax.nn.log_softmax(roi_score, axis=-1)
    cls_loss = -jnp.mean(logp[jnp.arange(n_sample), gt_roi_label])
    return loc_loss, cls_loss


if __name__ == "__main__":
    key = jax.random.PRNGKey(0)
    k1, k2, k3, k4 = jax.random.split(key, 4)

    n_sample, n_class = 16, 8
    gt_roi_loc = jax.random.normal(k1, (n_sample, 4), dtype=jnp.float32)
    gt_roi_label = jax.random.randint(k2, (n_sample,), 0, n_class,
                                      dtype=jnp.int32)
    roi_cls_loc = jax.random.normal(k3, (n_sample, n_class * 4),
                                    dtype=jnp.float32)
    roi_score = jax.random.normal(k4, (n_sample, n_class), dtype=jnp.float32)

    loc_loss, cls_loss = jax.block_until_ready(
        roi_loss(gt_roi_loc, gt_roi_label, roi_cls_loc, roi_score))

    ref_loc, ref_cls = _reference(gt_roi_loc, gt_roi_label, roi_cls_loc,
                                  roi_score)
    assert jnp.allclose(loc_loss, ref_loc, rtol=1e-5, atol=1e-5), \
        (loc_loss, ref_loc)
    assert jnp.allclose(cls_loss, ref_cls, rtol=1e-5, atol=1e-5), \
        (cls_loss, ref_cls)

    print("KERNEL_OK")
</pallas_src>

<mosaic_0001>
module attributes {stable_mosaic.version = 11 : i64} {
  func.func @_roi_loss_kernel(%arg0: memref<16x32xf32, #tpu.memory_space<vmem>>, %arg1: memref<16x8xf32, #tpu.memory_space<vmem>>, %arg2: memref<16x4xf32, #tpu.memory_space<vmem>>, %arg3: memref<16x1xi32, #tpu.memory_space<vmem>>, %arg4: memref<1x2xf32, #tpu.memory_space<vmem>>) attributes {dimension_semantics = [], scalar_prefetch = 0 : i64, scratch_operands = 0 : i64, tpu.core_type = #tpu.core_type<tc>} {
    %c0 = arith.constant 0 : index
    %c0_0 = arith.constant 0 : index
    %0 = vector.load %arg3[%c0, %c0_0] : memref<16x1xi32, #tpu.memory_space<vmem>>, vector<16x1xi32>
    %c0_i32 = arith.constant 0 : i32
    %1 = vector.broadcast %c0_i32 : i32 to vector<16x1xi32>
    %2 = arith.cmpi sgt, %0, %1 : vector<16x1xi32>
    %c0_1 = arith.constant 0 : index
    %c0_2 = arith.constant 0 : index
    %3 = vector.load %arg0[%c0_1, %c0_2] : memref<16x32xf32, #tpu.memory_space<vmem>>, vector<16x32xf32>
    %c0_3 = arith.constant 0 : index
    %c0_4 = arith.constant 0 : index
    %4 = vector.load %arg2[%c0_3, %c0_4] : memref<16x4xf32, #tpu.memory_space<vmem>>, vector<16x4xf32>
    %5 = tpu.iota {dimensions = array<i32: 1>} : vector<1x32xi32>
    %c2_i32 = arith.constant 2 : i32
    %6 = vector.broadcast %c2_i32 : i32 to vector<1x32xi32>
    %7 = arith.shrsi %5, %6 : vector<1x32xi32>
    %8 = vector.broadcast %7 : vector<1x32xi32> to vector<16x32xi32>
    %9 = vector.broadcast %0 : vector<16x1xi32> to vector<16x32xi32>
    %10 = arith.cmpi eq, %8, %9 : vector<16x32xi32>
    %cst = arith.constant 0.000000e+00 : f32
    %11 = vector.broadcast %cst : f32 to vector<16x32xf32>
    %12 = arith.select %10, %3, %11 : vector<16x32xi1>, vector<16x32xf32>
    %13 = tpu.iota {dimensions = array<i32: 0>} : vector<32x4xi32>
    %c3_i32 = arith.constant 3 : i32
    %14 = vector.broadcast %c3_i32 : i32 to vector<32x4xi32>
    %15 = arith.andi %13, %14 : vector<32x4xi32>
    %16 = tpu.iota {dimensions = array<i32: 1>} : vector<32x4xi32>
    %17 = arith.cmpi eq, %15, %16 : vector<32x4xi32>
    %18 = arith.extui %17 : vector<32x4xi1> to vector<32x4xi32>
    %19 = arith.sitofp %18 : vector<32x4xi32> to vector<32x4xf32>
    %cst_5 = arith.constant dense<0.000000e+00> : vector<16x4xf32>
    %20 = tpu.matmul %12, %19, %cst_5 {dimension_numbers = #tpu.dot_dimension_numbers<[1], [0], [0], [1], [0, 0, 1, 1], [], []>} : vector<16x32xf32>, vector<32x4xf32>, vector<16x4xf32> -> vector<16x4xf32>
    %21 = arith.subf %20, %4 : vector<16x4xf32>
    %cst_6 = arith.constant 0.000000e+00 : f32
    %22 = vector.shape_cast %2 : vector<16x1xi1> to vector<16x1xi1>
    %23 = vector.broadcast %22 : vector<16x1xi1> to vector<16x4xi1>
    %24 = vector.broadcast %cst_6 : f32 to vector<16x4xf32>
    %25 = arith.select %23, %21, %24 : vector<16x4xi1>, vector<16x4xf32>
    %26 = math.absf %25 : vector<16x4xf32>
    %cst_7 = arith.constant 1.000000e+00 : f32
    %27 = vector.broadcast %cst_7 : f32 to vector<16x4xf32>
    %28 = arith.cmpf olt, %26, %27 : vector<16x4xf32>
    %cst_8 = arith.constant 5.000000e-01 : f32
    %29 = vector.broadcast %cst_8 : f32 to vector<16x4xf32>
    %30 = arith.mulf %29, %25 : vector<16x4xf32>
    %31 = arith.mulf %30, %25 : vector<16x4xf32>
    %cst_9 = arith.constant 5.000000e-01 : f32
    %32 = vector.broadcast %cst_9 : f32 to vector<16x4xf32>
    %33 = arith.subf %26, %32 : vector<16x4xf32>
    %34 = arith.select %28, %31, %33 : vector<16x4xi1>, vector<16x4xf32>
    %cst_10 = arith.constant dense<0.000000e+00> : vector<16xf32>
    %35 = vector.multi_reduction <add>, %34, %cst_10 [1] : vector<16x4xf32> to vector<16xf32>
    %36 = vector.shape_cast %35 : vector<16xf32> to vector<16x1xf32>
    %cst_11 = arith.constant dense<0.000000e+00> : vector<1xf32>
    %37 = vector.multi_reduction <add>, %36, %cst_11 [0] : vector<16x1xf32> to vector<1xf32>
    %38 = vector.shape_cast %37 : vector<1xf32> to vector<1x1xf32>
    %c0_i32_12 = arith.constant 0 : i32
    %39 = vector.broadcast %c0_i32_12 : i32 to vector<16x1xi32>
    %40 = arith.cmpi sge, %0, %39 : vector<16x1xi32>
    %cst_13 = arith.constant 1.000000e+00 : f32
    %cst_14 = arith.constant 0.000000e+00 : f32
    %41 = vector.broadcast %cst_13 : f32 to vector<16x1xf32>
    %42 = vector.broadcast %cst_14 : f32 to vector<16x1xf32>
    %43 = arith.select %40, %41, %42 : vector<16x1xi1>, vector<16x1xf32>
    %cst_15 = arith.constant dense<0.000000e+00> : vector<1xf32>
    %44 = vector.multi_reduction <add>, %43, %cst_15 [0] : vector<16x1xf32> to vector<1xf32>
    %45 = vector.shape_cast %44 : vector<1xf32> to vector<1x1xf32>
    %c0_16 = arith.constant 0 : index
    %c0_17 = arith.constant 0 : index
    %46 = vector.load %arg1[%c0_16, %c0_17] : memref<16x8xf32, #tpu.memory_space<vmem>>, vector<16x8xf32>
    %47 = tpu.iota {dimensions = array<i32: 1>} : vector<1x8xi32>
    %cst_18 = arith.constant dense<0xFF800000> : vector<16xf32>
    %48 = vector.multi_reduction <maximumf>, %46, %cst_18 [1] : vector<16x8xf32> to vector<16xf32>
    %49 = vector.shape_cast %48 : vector<16xf32> to vector<16x1xf32>
    %50 = vector.broadcast %49 : vector<16x1xf32> to vector<16x8xf32>
    %51 = arith.subf %46, %50 : vector<16x8xf32>
    %52 = math.exp %51 : vector<16x8xf32>
    %cst_19 = arith.constant dense<0.000000e+00> : vector<16xf32>
    %53 = vector.multi_reduction <add>, %52, %cst_19 [1] : vector<16x8xf32> to vector<16xf32>
    %54 = vector.shape_cast %53 : vector<16xf32> to vector<16x1xf32>
    %55 = math.log %54 : vector<16x1xf32>
    %56 = arith.addf %49, %55 : vector<16x1xf32>
    %57 = vector.broadcast %47 : vector<1x8xi32> to vector<16x8xi32>
    %58 = vector.broadcast %0 : vector<16x1xi32> to vector<16x8xi32>
    %59 = arith.cmpi eq, %57, %58 : vector<16x8xi32>
    %cst_20 = arith.constant 0.000000e+00 : f32
    %60 = vector.broadcast %cst_20 : f32 to vector<16x8xf32>
    %61 = arith.select %59, %46, %60 : vector<16x8xi1>, vector<16x8xf32>
    %cst_21 = arith.constant dense<0.000000e+00> : vector<16xf32>
    %62 = vector.multi_reduction <add>, %61, %cst_21 [1] : vector<16x8xf32> to vector<16xf32>
    %63 = vector.shape_cast %62 : vector<16xf32> to vector<16x1xf32>
    %64 = arith.subf %56, %63 : vector<16x1xf32>
    %cst_22 = arith.constant dense<0.000000e+00> : vector<1xf32>
    %65 = vector.multi_reduction <add>, %64, %cst_22 [0] : vector<16x1xf32> to vector<1xf32>
    %66 = vector.shape_cast %65 : vector<1xf32> to vector<1x1xf32>
    %67 = arith.divf %38, %45 : vector<1x1xf32>
    %cst_23 = arith.constant 6.250000e-02 : f32
    %68 = vector.broadcast %cst_23 : f32 to vector<1x1xf32>
    %69 = arith.mulf %66, %68 : vector<1x1xf32>
    %70 = tpu.iota {dimensions = array<i32: 1>} : vector<1x2xi32>
    %c0_i32_24 = arith.constant 0 : i32
    %71 = vector.broadcast %c0_i32_24 : i32 to vector<1x2xi32>
    %72 = arith.cmpi eq, %70, %71 : vector<1x2xi32>
    %73 = vector.shape_cast %67 : vector<1x1xf32> to vector<1x1xf32>
    %74 = vector.broadcast %73 : vector<1x1xf32> to vector<1x2xf32>
    %75 = vector.shape_cast %69 : vector<1x1xf32> to vector<1x1xf32>
    %76 = vector.broadcast %75 : vector<1x1xf32> to vector<1x2xf32>
    %77 = arith.select %72, %74, %76 : vector<1x2xi1>, vector<1x2xf32>
    %c0_25 = arith.constant 0 : index
    %c0_26 = arith.constant 0 : index
    %78 = vector.load %arg4[%c0_25, %c0_26] : memref<1x2xf32, #tpu.memory_space<vmem>>, vector<1x2xf32>
    tpu.vector_store %arg4[%c0_25, %c0_26], %77 {strides = array<i32>} : memref<1x2xf32, #tpu.memory_space<vmem>>, vector<1x2xf32>,
    return
  }
}

</mosaic_0001>

<llo_original>
// kernel: tpu_custom_call.1
$region0: #{tpu_custom_call.1}
  #allocation0 [shape = 'u32[]', space=smem, size = 0x4, offset = 0x4, fixed_abs, tag = 'smem constant byte address 0x4 - core index']
  #allocation1 [shape = 'u32[144,128]{1,0:T(1,128)}', space=vmem, size = 0x12000, scoped, tag = 'internal scratch']
  %s0 = inlined_call_operand.vmem [shape: f32[16,32], index: 0, kind: input, shape index: {}]
  %s1 = inlined_call_operand.vmem [shape: f32[16,8], index: 1, kind: input, shape index: {}]
  %s2 = inlined_call_operand.vmem [shape: f32[16,4], index: 2, kind: input, shape index: {}]
  %s3 = inlined_call_operand.vmem [shape: s32[16,1], index: 3, kind: input, shape index: {}]
  %s4 = inlined_call_operand.hbm [shape: f32[1,2], index: 4, kind: output, shape index: {}]
  %s5 = sld [smem:[#allocation0]]
  $region26: #{tpu_custom_call.1} parent=0
    _
  %s7 = ssub.s32 1, %s5
  %s8 = scalar_select 0, %s7, %s5
  $region1: #{tpu_custom_call.1} parent=0
    #allocation2 [shape = 'u8[512]{0}', space=vmem, size = 0x400, scoped, tag = 'output window, operand 0, single buffered']
    #allocation3 [shape = 's32[1]{0}', space=sflag, size = 0x4, scoped, tag = 'scoped memory for tpu_custom_call.1']
    %9 = vsyncpa [#allocation3], 0
    // Predicated region
    $region2: #{tpu_custom_call.1} parent=1 // pred_check
      _
    $region3: #{tpu_custom_call.1} parent=1 // pred_check_branch
      %11 = sbr.rel (0) target = $region5
    $region4: #{tpu_custom_call.1} parent=1 // pred_region
      _
    $region5: #{tpu_custom_call.1} parent=1 // pred_fallthru
      _
    // Predicated region
    $region6: #{tpu_custom_call.1} parent=1 // pred_check
      _
    $region7: #{tpu_custom_call.1} parent=1 // pred_check_branch
      %13 = sbr.rel (0) target = $region9
    $region8: #{tpu_custom_call.1} parent=1 // pred_region
      _
    $region9: #{tpu_custom_call.1} parent=1 // pred_fallthru
      _
    // Predicated region
    $region10: #{tpu_custom_call.1} parent=1 // pred_check
      _
    $region11: #{tpu_custom_call.1} parent=1 // pred_check_branch
      %15 = sbr.rel (0) target = $region13
    $region12: #{tpu_custom_call.1} parent=1 // pred_region
      _
    $region13: #{tpu_custom_call.1} parent=1 // pred_fallthru
      _
    // Predicated region
    $region14: #{tpu_custom_call.1} parent=1 // pred_check
      _
    $region15: #{tpu_custom_call.1} parent=1 // pred_check_branch
      %17 = sbr.rel (0) target = $region17
    $region16: #{tpu_custom_call.1} parent=1 // pred_region
      _
    $region17: #{tpu_custom_call.1} parent=1 // pred_fallthru
      _
    %v18 = vld [vmem:[%s3] sm:$0xff]
    %v19 = vld [vmem:[%s3 + $0x8] sm:$0xff]
    %vm20 = vcmp.gt.s32.totalorder %v18, 0
    %vm21 = vcmp.gt.s32.totalorder %v19, 0
    %v22 = vld [vmem:[%s0] sm:$0xff]
    %v23 = vld [vmem:[%s0 + $0x8] sm:$0xff]
    %v24 = vld [vmem:[%s2] sm:$0xff]
    %v25 = vld [vmem:[%s2 + $0x8] sm:$0xff]
    %v26 = vlaneseq
    %v27 = vand.u32 %v26, 127
    %v28 = vshra.s32 %v27, 2
    %29 = vset.pattern.permute.xlu0 0
    %30 = vperm.xlu0 %29, %v18
    %v31 = vpop.permute.xlu0 %30
    %32 = vset.pattern.permute.xlu0 0
    %33 = vperm.xlu0 %32, %v19
    %v34 = vpop.permute.xlu0 %33
    %vm35 = vcmp.eq.s32.totalorder %v28, %v31
    %vm36 = vcmp.eq.s32.totalorder %v28, %v34
    %v37 = vsel %vm35, %v22, 0.0
    %v38 = vsel %vm36, %v23, 0.0
    %v39 = vlaneseq
    %v40 = vshrl.u32 %v39, 7
    %v41 = vadd.s32 %v40, 8
    %v42 = vadd.s32 %v40, 16
    %v43 = vadd.s32 %v40, 24
    %v44 = vand.u32 %v40, 3
    %v45 = vand.u32 %v41, 3
    %v46 = vand.u32 %v42, 3
    %v47 = vand.u32 %v43, 3
    %vm48 = vcmp.eq.s32.totalorder %v44, %v27
    %vm49 = vcmp.eq.s32.totalorder %v45, %v27
    %vm50 = vcmp.eq.s32.totalorder %v46, %v27
    %vm51 = vcmp.eq.s32.totalorder %v47, %v27
    %v52 = vsel %vm48, 1, 0
    %v53 = vsel %vm49, 1, 0
    %v54 = vsel %vm50, 1, 0
    %v55 = vsel %vm51, 1, 0
    %v56 = vcvt.s32.f32 %v52
    %v57 = vcvt.s32.f32 %v53
    %v58 = vcvt.s32.f32 %v54
    %v59 = vcvt.s32.f32 %v55
    %vm60 = vcmask 261120
    %v62 = vsel %vm60, %v37, 0
    %v65 = vsel %vm60, %v38, 0
    %67 = vmatprep.subr.mxu0 0.0
    %68 = vmatpush1.msra.mxu0 0.0
    %69 = vmatprep.subr.mxu0 0.0
    %70 = vmatpush1.msra.mxu0 0.0
    %71 = vmatprep.subr.mxu0 0.0
    %72 = vmatpush1.msra.mxu0 0.0
    %73 = vmatprep.subr.mxu0 0.0
    %74 = vmatpush1.msra.mxu0 0.0
    %75 = vmatprep.subr.mxu0 0.0
    %76 = vmatpush1.msra.mxu0 0.0
    %77 = vmatprep.subr.mxu0 0.0
    %78 = vmatpush1.msra.mxu0 0.0
    %79 = vmatprep.subr.mxu0 0.0
    %80 = vmatpush1.msra.mxu0 0.0
    %81 = vmatprep.subr.mxu0 0.0
    %82 = vmatpush1.msra.mxu0 0.0
    %83 = vmatprep.subr.mxu0 0.0
    %84 = vmatpush1.msra.mxu0 0.0
    %85 = vmatprep.subr.mxu0 0.0
    %86 = vmatpush1.msra.mxu0 0.0
    %87 = vmatprep.subr.mxu0 0.0
    %88 = vmatpush1.msra.mxu0 0.0
    %89 = vmatprep.subr.mxu0 0.0
    %90 = vmatpush1.msra.mxu0 0.0
    %91 = vmatprep.subr.mxu0 0.0
    %92 = vmatpush1.msra.mxu0 %v59
    %93 = vmatprep.subr.mxu0 0.0
    %94 = vmatpush1.msra.mxu0 %v58
    %95 = vmatprep.subr.mxu0 0.0
    %96 = vmatpush1.msra.mxu0 %v57
    %97 = vmatprep.subr.mxu0 0.0
    %98 = vmatpush1.msra.mxu0 %v56
    %99 = vmatprep.subr.mxu0 0.0
    %100 = vmatpush2.msra.mxu0 0.0
    %101 = vmatprep.subr.mxu0 0.0
    %102 = vmatpush2.msra.mxu0 0.0
    %103 = vmatprep.subr.mxu0 0.0
    %104 = vmatpush2.msra.mxu0 0.0
    %105 = vmatprep.subr.mxu0 0.0
    %106 = vmatpush2.msra.mxu0 0.0
    %107 = vmatprep.subr.mxu0 0.0
    %108 = vmatpush2.msra.mxu0 0.0
    %109 = vmatprep.subr.mxu0 0.0
    %110 = vmatpush2.msra.mxu0 0.0
    %111 = vmatprep.subr.mxu0 0.0
    %112 = vmatpush2.msra.mxu0 0.0
    %113 = vmatprep.subr.mxu0 0.0
    %114 = vmatpush2.msra.mxu0 0.0
    %115 = vmatprep.subr.mxu0 0.0
    %116 = vmatpush2.msra.mxu0 0.0
    %117 = vmatprep.subr.mxu0 0.0
    %118 = vmatpush2.msra.mxu0 0.0
    %119 = vmatprep.subr.mxu0 0.0
    %120 = vmatpush2.msra.mxu0 0.0
    %121 = vmatprep.subr.mxu0 0.0
    %122 = vmatpush2.msra.mxu0 0.0
    %123 = vmatprep.subr.mxu0 0.0
    %124 = vmatpush2.msra.mxu0 0.0
    %125 = vmatprep.subr.mxu0 0.0
    %126 = vmatpush2.msra.mxu0 0.0
    %127 = vmatprep.subr.mxu0 0.0
    %128 = vmatpush2.msra.mxu0 0.0
    %129 = vmatprep.subr.mxu0 0.0
    %130 = vmatpush2.msra.mxu0 0.0
    %131 = vmatprep.mubr.f32.mxu0 0.0
    %132 = vmatmul.mubr.f32.gmra.mxu0 %v62
    %v133 = vpop.f32.mrf.mxu0
    %v134 = vadd.f32 0.0, %v133
    %v135 = vpop.f32.mrf.mxu0
    %136 = vmatprep.mubr.f32.mxu0 0.0
    %137 = vmatmul.mubr.f32.gmra.mxu0 %v65
    %v138 = vpop.f32.mrf.mxu0
    %v139 = vadd.f32 0.0, %v138
    %v140 = vpop.f32.mrf.mxu0
    %141 = vdwg.mxu0
    %v142 = vsub.f32 %v134, %v24
    %v143 = vsub.f32 %v139, %v25
    %v144 = vsel %vm20, 1, 0
    %v145 = vsel %vm21, 1, 0
    %146 = vset.pattern.permute.xlu0 0
    %147 = vperm.xlu0 %146, %v144
    %v148 = vpop.permute.xlu0 %147
    %149 = vset.pattern.permute.xlu0 0
    %150 = vperm.xlu0 %149, %v145
    %v151 = vpop.permute.xlu0 %150
    %vm152 = vcmp.eq.s32.totalorder %v148, 1
    %vm153 = vcmp.eq.s32.totalorder %v151, 1
    %v154 = vsel %vm152, %v142, 0.0
    %v155 = vsel %vm153, %v143, 0.0
    %v156 = vand.u32 2147483647, %v154
    %v157 = vand.u32 2147483647, %v155
    %vm158 = vcmp.lt.f32.partialorder %v156, 1.0
    %vm159 = vcmp.lt.f32.partialorder %v157, 1.0
    %v160 = vmul.f32 %v154, 0.5
    %v161 = vmul.f32 %v155, 0.5
    %v162 = vmul.f32 %v160, %v154
    %v163 = vmul.f32 %v161, %v155
    %v164 = vsub.f32 %v156, 0.5
    %v165 = vsub.f32 %v157, 0.5
    %v166 = vsel %vm158, %v162, %v164
    %v167 = vsel %vm159, %v163, %v165
    %vm168 = vcmask 31744
    %v169 = vsel %vm168, %v166, 0.0
    %170 = vadd.xlane.f32.xlu0 %v169
    %v171 = vpop.xlane.xlu0 %170
    %v172 = vsel %vm168, %v167, 0.0
    %173 = vadd.xlane.f32.xlu0 %v172
    %v174 = vpop.xlane.xlu0 %173
    %v175 = vadd.f32 %v171, %v174
    %v176 = vrot.slane %v175, 4
    %v177 = vadd.f32 %v175, %v176
    %v178 = vrot.slane %v177, 2
    %v179 = vadd.f32 %v177, %v178
    %v180 = vrot.slane %v179, 1
    %v181 = vadd.f32 %v179, %v180
    %vm182 = vcmp.ge.s32.totalorder %v18, 0
    %vm183 = vcmp.ge.s32.totalorder %v19, 0
    %v184 = vsel %vm182, 1.0, 0.0
    %v185 = vsel %vm183, 1.0, 0.0
    %vm186 = vcmask 7168
    %v187 = vsel %vm186, %v184, 0.0
    %v188 = vsel %vm186, %v185, 0.0
    %v189 = vadd.f32 %v187, %v188
    %v190 = vrot.slane %v189, 4
    %v191 = vadd.f32 %v189, %v190
    %v192 = vrot.slane %v191, 2
    %v193 = vadd.f32 %v191, %v192
    %v194 = vrot.slane %v193, 1
    %v195 = vadd.f32 %v193, %v194
    %v196 = vld [vmem:[%s1] sm:$0xff]
    %v197 = vld [vmem:[%s1 + $0x8] sm:$0xff]
    %vm198 = vcmask 64512
    %v199 = vsel %vm198, %v196, -inf
    %200 = vmax.xlane.f32.xlu0 %v199
    %v201 = vpop.xlane.xlu0 %200
    %v202 = vsel %vm198, %v197, -inf
    %203 = vmax.xlane.f32.xlu0 %v202
    %v204 = vpop.xlane.xlu0 %203
    %v205 = vsub.f32 %v196, %v201
    %v206 = vsub.f32 %v197, %v204
    %v207 = vmul.f32 %v205, 1.442695
    %v208 = vpow.pop %v207
    %v209 = vmul.f32 %v206, 1.442695
    %v210 = vpow.pop %v209
    %v211 = vsel %vm198, %v208, 0.0
    %212 = vadd.xlane.f32.xlu0 %v211
    %v213 = vpop.xlane.xlu0 %212
    %v214 = vsel %vm198, %v210, 0.0
    %215 = vadd.xlane.f32.xlu0 %v214
    %v216 = vpop.xlane.xlu0 %215
    %v217 = vlog2.pop %v213
    %v218 = vmul.f32 %v217, 0.6931472
    %v219 = vlog2.pop %v216
    %v220 = vmul.f32 %v219, 0.6931472
    %v221 = vadd.f32 %v201, %v218
    %v222 = vadd.f32 %v204, %v220
    %vm223 = vcmp.eq.s32.totalorder %v27, %v31
    %vm224 = vcmp.eq.s32.totalorder %v27, %v34
    %v225 = vsel %vm223, %v196, 0.0
    %v226 = vsel %vm224, %v197, 0.0
    %v227 = vsel %vm198, %v225, 0.0
    %228 = vadd.xlane.f32.xlu0 %v227
    %v229 = vpop.xlane.xlu0 %228
    %v230 = vsel %vm198, %v226, 0.0
    %231 = vadd.xlane.f32.xlu0 %v230
    %v232 = vpop.xlane.xlu0 %231
    %v233 = vsub.f32 %v221, %v229
    %v234 = vsub.f32 %v222, %v232
    %v235 = vadd.f32 %v233, %v234
    %v236 = vrot.slane %v235, 4
    %v237 = vadd.f32 %v235, %v236
    %v238 = vrot.slane %v237, 2
    %v239 = vadd.f32 %v237, %v238
    %v240 = vrot.slane %v239, 1
    %v241 = vadd.f32 %v239, %v240
    %v242 = vrcp.pop %v195
    %v243 = vmul.f32 %v181, %v242
    %v244 = vmul.f32 %v241, 0.0625
    %vm245 = vcmp.eq.s32.totalorder %v27, 0
    %247 = vset.pattern.permute.xlu0 0
    %248 = vperm.xlu0 %247, %v243
    %v249 = vpop.permute.xlu0 %248
    %v251 = vsel %vm245, %v249, %v244
    %vm252 = vcmask 8192
    %253 = vst.msk [vmem:[#allocation2] sm:$0x1] %vm252, %v251
    // Predicated region
    $region18: #{tpu_custom_call.1} parent=1 // pred_check
      _
    $region19: #{tpu_custom_call.1} parent=1 // pred_check_branch
      %255 = sbr.rel (0) target = $region21
    $region20: #{tpu_custom_call.1} parent=1 // pred_region
      %s257 = ssub.s32 16, 16
      %258 = vsyncadd [#allocation3], %s257
      %s260 = sshll.u32 [#allocation2], 4
      %s261 = int_to_ptr.vmem [resolvable:$true] %s260
      %263 = dma.vmem_to_hbm [thread:$0]  %s261, 16, %s4, [#allocation3]
    $region21: #{tpu_custom_call.1} parent=1 // pred_fallthru
      _
    // Predicated region
    $region22: #{tpu_custom_call.1} parent=1 // pred_check
      _
    $region23: #{tpu_custom_call.1} parent=1 // pred_check_branch
      %265 = sbr.rel (0) target = $region25
    $region24: #{tpu_custom_call.1} parent=1 // pred_region
      %266 = dma.done [#allocation3], 16
    $region25: #{tpu_custom_call.1} parent=1 // pred_fallthru
      _
    %267 = vsyncpa [#allocation3], 1

</llo_original>
